<compile_context>
chip_gen: v7x
topology: tpu7x:2x2x1
jax: 0.10.0
libtpu: 0.0.40
codegen_flags: <defaults>
</compile_context>

<pallas_src>
import numpy as np
import jax
import jax.numpy as jnp
from jax.experimental import pallas as pl
from jax.experimental.pallas import tpu as pltpu


def get_positional_embeddings(sequence_length: int, d: int) -> np.ndarray:
    """Vectorized, numerically identical to the PyTorch helper (sin on even dims, cos on odd)."""
    i = np.arange(sequence_length, dtype=np.float64)[:, None]
    j = np.arange(d, dtype=np.float64)[None, :]
    j_even = np.where(j % 2 == 0, j, j - 1.0)
    angle = i / np.power(10000.0, j_even / d)
    result = np.where(j % 2 == 0, np.sin(angle), np.cos(angle))
    return result[None].astype(np.float32)  # (1, seq, d)


def _round_up(x: int, m: int) -> int:
    return (x + m - 1) // m * m


def _vmem_capacity_bytes() -> int:
    """Physical VMEM per core; conservative 64 MiB fallback (matches v7x, safe on v5e/v6e)."""
    cap = 64 << 20
    try:
        info = pltpu.get_tpu_info()
        cap = int(getattr(info, "vmem_capacity_bytes", cap))
    except Exception:
        pass
    return cap


def _choose_bt(B: int, rows: int, kp: int, ep: int, out_itemsize: int,
               vmem_capacity: int) -> int:
    """Largest batch tile whose per-step footprint fits ~40% of physical VMEM.

    Footprint counts double-buffered input/output blocks, the grid-invariant weight/add
    operands (assumed double-buffered, conservative) and the in-kernel f32 projection
    temporaries.  A >=2-step grid (for 2-TensorCore parts) is only kept when each block
    still holds >=512 rows, where a mem-bound kernel is already near the HBM roofline.
    """
    budget = int(0.40 * vmem_capacity)

    def footprint(bt: int) -> int:
        m = bt * rows
        blocks = 2 * (m * kp * 2 + m * ep * out_itemsize)   # dbl-buffered patches(bf16)+out
        invar = 2 * (kp * ep * 2 + rows * ep * 4)           # weight(bf16) + add(f32)
        temps = 2 * m * ep * 4                              # f32 proj + add intermediates
        return blocks + invar + temps

    fits = [bt for bt in range(1, B + 1) if B % bt == 0 and footprint(bt) <= budget]
    if not fits:
        return 1
    best = max(fits)
    multi = [bt for bt in fits if B // bt >= 2]
    if multi and max(multi) * rows >= 512:
        best = max(multi)
    return best


def _patch_embed_kernel(p_ref, w_ref, add_ref, o_ref):
    # p_ref:   (Bt, Npad, Kp)   bf16  flattened patches (row N == zero row for the cls token)
    # w_ref:   (Kp, Ep)         bf16  conv weight as a projection matrix (zero-padded)
    # add_ref: (1, Npad, Ep)    f32   precomputed pos+bias (patch rows) / pos+cls (cls row)
    # o_ref:   (Bt, Npad, Ep)   out   output block (one dense lane-aligned full-block store)
    bt, npad, kp = p_ref.shape
    ep = w_ref.shape[1]
    lhs = p_ref[...].reshape(bt * npad, kp)          # layout no-op: Npad is a multiple of 16
    proj = jnp.dot(lhs, w_ref[...], preferred_element_type=jnp.float32)   # MXU, f32 acc
    o_ref[...] = (proj.reshape(bt, npad, ep) + add_ref[...]).astype(o_ref.dtype)


def patch_embedding_forward(x, conv_w, conv_b, cls_token, pos_emb, patch_size,
                            out_dtype=jnp.float32):
    """
    x:         (B, C, H, W)  float32, NCHW (same layout as the PyTorch nn.Conv2d input)
    conv_w:    (E, C, P, P)  Conv2d weight (kernel=stride=P)
    conv_b:    (E,)          Conv2d bias
    cls_token: (1, 1, E)
    pos_emb:   (1, N+1, E)
    returns:   (B, N+1, E)   out_dtype (cls token appended at the END of the sequence)
    """
    B, C, H, W = x.shape
    P = patch_size
    E = conv_w.shape[0]
    Hp, Wp = H // P, W // P
    N = Hp * Wp
    K = C * P * P
    S = N + 1

    # Padded (vreg/MXU-aligned) dims.  Npad is a multiple of 16 so the bf16 sublane packing
    # makes the in-kernel reshape a pure layout no-op; K and E pad to the 128-lane grid.
    Npad = _round_up(S, 16)
    Kp = _round_up(K, 128)
    Ep = _round_up(E, 128)

    # --- glue: extract non-overlapping patches, flatten in (C, P, P) order ---
    # Single fused XLA transpose+pad+bf16-cast; see TODO(synk) above about fusing this in-kernel.
    patches = x.reshape(B, C, Hp, P, Wp, P).transpose(0, 2, 4, 1, 3, 5).reshape(B, N, K)
    # Zero row N (cls row -> projection 0) + alignment rows/cols, then bf16 for the MXU.
    patches = jnp.pad(patches, ((0, 0), (0, Npad - N), (0, Kp - K))).astype(jnp.bfloat16)

    w_mat = jnp.pad(conv_w.reshape(E, K).T, ((0, Kp - K), (0, Ep - E))).astype(jnp.bfloat16)

    # Single additive tensor (f32): patch rows -> pos + bias ; cls row -> pos + cls.
    add = jnp.zeros((Npad, Ep), jnp.float32)
    add = add.at[:N, :E].set(pos_emb[0, :N, :] + conv_b[None, :])
    add = add.at[N, :E].set(pos_emb[0, N, :] + cls_token[0, 0, :])
    add = add[None]                                            # (1, Npad, Ep)

    out_itemsize = jnp.dtype(out_dtype).itemsize
    vmem_cap = _vmem_capacity_bytes()
    Bt = _choose_bt(B, Npad, Kp, Ep, out_itemsize, vmem_cap)
    grid = B // Bt
    vmem_limit = max(min(int(0.75 * vmem_cap), 100 << 20), 32 << 20)

    flops = 2 * B * Npad * Kp * Ep
    bytes_accessed = (B * Npad * Kp * 2                 # patches (bf16)
                      + Kp * Ep * 2                     # weight  (bf16)
                      + Npad * Ep * 4                   # add     (f32)
                      + B * Npad * Ep * out_itemsize)   # output

    out = pl.pallas_call(
        _patch_embed_kernel,
        out_shape=jax.ShapeDtypeStruct((B, Npad, Ep), out_dtype),
        grid_spec=pltpu.PrefetchScalarGridSpec(
            num_scalar_prefetch=0,
            grid=(grid,),
            in_specs=[
                pl.BlockSpec((Bt, Npad, Kp), lambda b: (b, 0, 0)),
                # Grid-invariant operands (constant index_map -> fetched once).
                pl.BlockSpec((Kp, Ep), lambda b: (0, 0)),
                pl.BlockSpec((1, Npad, Ep), lambda b: (0, 0, 0)),
            ],
            out_specs=pl.BlockSpec((Bt, Npad, Ep), lambda b: (b, 0, 0)),
        ),
        compiler_params=pltpu.CompilerParams(
            dimension_semantics=("parallel",),
            vmem_limit_bytes=vmem_limit),
        cost_estimate=pl.CostEstimate(flops=flops, transcendentals=0,
                                      bytes_accessed=bytes_accessed),
    )(patches, w_mat, add)

    # Strip alignment padding.
    return out[:, :S, :E]


def _reference_forward(x, conv_w, conv_b, cls_token, pos_emb, patch_size):
    """Pure-JAX f32 reference (same math as the PyTorch module)."""
    B, C, H, W = x.shape
    P = patch_size
    E = conv_w.shape[0]
    Hp, Wp = H // P, W // P
    N = Hp * Wp
    patches = x.reshape(B, C, Hp, P, Wp, P).transpose(0, 2, 4, 1, 3, 5).reshape(B, N, C * P * P)
    proj = jnp.einsum("bnk,ek->bne", patches, conv_w.reshape(E, -1)) + conv_b[None, None, :]
    cls = jnp.broadcast_to(cls_token, (B, 1, E))
    seq = jnp.concatenate([proj, cls], axis=1)
    return seq + pos_emb


if __name__ == "__main__":
    # Small shapes consistent with the module: img=16, patch=4 -> 16 patches (+1 cls)
    img_size, patch_size, in_chans, embed_dim = 16, 4, 4, 32
    B = 2
    n_patches = (img_size // patch_size) ** 2

    key = jax.random.PRNGKey(0)
    kx, kw, kb, kc = jax.random.split(key, 4)
    x = jax.random.normal(kx, (B, in_chans, img_size, img_size), dtype=jnp.float32)
    conv_w = jax.random.normal(kw, (embed_dim, in_chans, patch_size, patch_size),
                               dtype=jnp.float32) * 0.02
    conv_b = jax.random.normal(kb, (embed_dim,), dtype=jnp.float32) * 0.02
    cls_token = jax.random.normal(kc, (1, 1, embed_dim), dtype=jnp.float32)
    pos_emb = jnp.asarray(get_positional_embeddings(n_patches + 1, embed_dim))

    out = patch_embedding_forward(x, conv_w, conv_b, cls_token, pos_emb, patch_size)
    out = jax.block_until_ready(out)

    ref = _reference_forward(x, conv_w, conv_b, cls_token, pos_emb, patch_size)
    assert out.shape == (B, n_patches + 1, embed_dim), out.shape
    # bf16 MXU inputs with f32 accumulation -> relaxed (but still tight) tolerance vs f32 ref.
    np.testing.assert_allclose(np.asarray(out), np.asarray(ref), rtol=1e-2, atol=1e-2)

    print("KERNEL_OK")
</pallas_src>

<mosaic_0001>
module attributes {stable_mosaic.version = 11 : i64} {
  func.func @_patch_embed_kernel(%arg0: i32, %arg1: memref<2x32x128xbf16, #tpu.memory_space<vmem>>, %arg2: memref<128x128xbf16, #tpu.memory_space<vmem>>, %arg3: memref<1x32x128xf32, #tpu.memory_space<vmem>>, %arg4: memref<2x32x128xf32, #tpu.memory_space<vmem>>) attributes {dimension_semantics = [#tpu.dimension_semantics<parallel>], iteration_bounds = array<i64: 1>, scalar_prefetch = 0 : i64, scratch_operands = 0 : i64, tpu.core_type = #tpu.core_type<tc>, window_params = [{transform_indices = @transform_0, window_bounds = array<i64: 2, 32, 128>}, {pipeline_mode = #tpu.pipeline_mode<synchronous>, transform_indices = @transform_1, window_bounds = array<i64: 128, 128>}, {pipeline_mode = #tpu.pipeline_mode<synchronous>, transform_indices = @transform_2, window_bounds = array<i64: 1, 32, 128>}, {transform_indices = @transform_3, window_bounds = array<i64: 2, 32, 128>}]} {
    %c0 = arith.constant 0 : index
    %c0_0 = arith.constant 0 : index
    %c0_1 = arith.constant 0 : index
    %0 = vector.load %arg1[%c0, %c0_0, %c0_1] : memref<2x32x128xbf16, #tpu.memory_space<vmem>>, vector<2x32x128xbf16>
    %1 = vector.shape_cast %0 : vector<2x32x128xbf16> to vector<64x128xbf16>
    %c0_2 = arith.constant 0 : index
    %c0_3 = arith.constant 0 : index
    %2 = vector.load %arg2[%c0_2, %c0_3] : memref<128x128xbf16, #tpu.memory_space<vmem>>, vector<128x128xbf16>
    %cst = arith.constant dense<0.000000e+00> : vector<64x128xf32>
    %3 = tpu.matmul %1, %2, %cst {dimension_numbers = #tpu.dot_dimension_numbers<[1], [0], [0], [1], [0, 0, 1, 1], [], []>} : vector<64x128xbf16>, vector<128x128xbf16>, vector<64x128xf32> -> vector<64x128xf32>
    %4 = vector.shape_cast %3 : vector<64x128xf32> to vector<2x32x128xf32>
    %c0_4 = arith.constant 0 : index
    %c0_5 = arith.constant 0 : index
    %c0_6 = arith.constant 0 : index
    %5 = vector.load %arg3[%c0_4, %c0_5, %c0_6] : memref<1x32x128xf32, #tpu.memory_space<vmem>>, vector<1x32x128xf32>
    %6 = vector.broadcast %5 : vector<1x32x128xf32> to vector<2x32x128xf32>
    %7 = arith.addf %4, %6 : vector<2x32x128xf32>
    %c0_7 = arith.constant 0 : index
    %c0_8 = arith.constant 0 : index
    %c0_9 = arith.constant 0 : index
    %8 = vector.load %arg4[%c0_7, %c0_8, %c0_9] : memref<2x32x128xf32, #tpu.memory_space<vmem>>, vector<2x32x128xf32>
    tpu.vector_store %arg4[%c0_7, %c0_8, %c0_9], %7 {strides = array<i32>} : memref<2x32x128xf32, #tpu.memory_space<vmem>>, vector<2x32x128xf32>,
    return
  }
  func.func @transform_0(%arg0: i32) -> (i32, i32, i32) {
    %c0_i32 = arith.constant 0 : i32
    %c0_i32_0 = arith.constant 0 : i32
    %c0_i32_1 = arith.constant 0 : i32
    return %arg0, %c0_i32, %c0_i32_0 : i32, i32, i32
  }
  func.func @transform_1(%arg0: i32) -> (i32, i32) {
    %c0_i32 = arith.constant 0 : i32
    %c0_i32_0 = arith.constant 0 : i32
    %c0_i32_1 = arith.constant 0 : i32
    return %c0_i32, %c0_i32_0 : i32, i32
  }
  func.func @transform_2(%arg0: i32) -> (i32, i32, i32) {
    %c0_i32 = arith.constant 0 : i32
    %c0_i32_0 = arith.constant 0 : i32
    %c0_i32_1 = arith.constant 0 : i32
    %c0_i32_2 = arith.constant 0 : i32
    return %c0_i32, %c0_i32_0, %c0_i32_1 : i32, i32, i32
  }
  func.func @transform_3(%arg0: i32) -> (i32, i32, i32) {
    %c0_i32 = arith.constant 0 : i32
    %c0_i32_0 = arith.constant 0 : i32
    %c0_i32_1 = arith.constant 0 : i32
    return %arg0, %c0_i32, %c0_i32_0 : i32, i32, i32
  }
}

</mosaic_0001>

<llo_original>
// kernel: tpu_custom_call.1
$region0: #{tpu_custom_call.1}
  #allocation0 [shape = 'u32[]', space=smem, size = 0x4, offset = 0x4, fixed_abs, tag = 'smem constant byte address 0x4 - core index']
  #allocation1 [shape = 'u32[144,128]{1,0:T(1,128)}', space=vmem, size = 0x12000, scoped, tag = 'internal scratch']
  %s0 = inlined_call_operand.hbm [shape: bf16[2,32,128], index: 0, kind: input, shape index: {}]
  %s1 = inlined_call_operand.hbm [shape: bf16[128,128], index: 1, kind: input, shape index: {}]
  %s2 = inlined_call_operand.hbm [shape: f32[1,32,128], index: 2, kind: input, shape index: {}]
  %s3 = inlined_call_operand.hbm [shape: f32[2,32,128], index: 3, kind: output, shape index: {}]
  %s4 = sld [smem:[#allocation0]]
  $region34: #{tpu_custom_call.1} parent=0
    _
  %s6 = ssub.s32 1, %s4
  %s7 = scalar_select 0, %s6, %s4
  $region1: #{tpu_custom_call.1} parent=0
    #allocation2 [shape = 'u8[16384]{0}', space=vmem, size = 0x4000, scoped, tag = 'input window, operand 0, single buffered']
    #allocation3 [shape = 's32[1]{0}', space=sflag, size = 0x4, scoped, tag = 'scoped memory for tpu_custom_call.1']
    #allocation4 [shape = 's32[1]{0}', space=sflag, size = 0x4, scoped, tag = 'scoped memory for tpu_custom_call.1']
    #allocation5 [shape = 'u8[32768]{0}', space=vmem, size = 0x8000, scoped, tag = 'input window, operand 1, single buffered']
    #allocation6 [shape = 's32[1]{0}', space=sflag, size = 0x4, scoped, tag = 'scoped memory for tpu_custom_call.1']
    #allocation7 [shape = 'u8[16384]{0}', space=vmem, size = 0x4000, scoped, tag = 'input window, operand 2, single buffered']
    #allocation8 [shape = 'u8[32768]{0}', space=vmem, size = 0x8000, scoped, tag = 'output window, operand 0, single buffered']
    %8 = vsyncpa [#allocation3], 0
    %9 = vsyncpa [#allocation6], 0
    %10 = vsyncpa [#allocation4], 0
    // Predicated region
    $region2: #{tpu_custom_call.1} parent=1 // pred_check
      _
    $region3: #{tpu_custom_call.1} parent=1 // pred_check_branch
      %12 = sbr.rel (0) target = $region5
    $region4: #{tpu_custom_call.1} parent=1 // pred_region
      %s14 = ssub.s32 512, 512
      %15 = vsyncadd [#allocation3], %s14
      %s16 = sshll.u32 [#allocation2], 4
      %s17 = int_to_ptr.vmem [resolvable:$true] %s16
      %22 = dma.hbm_to_vmem [thread:$0]  %s0, 512, %s17, [#allocation3], 64, 64, 4
    $region5: #{tpu_custom_call.1} parent=1 // pred_fallthru
      _
    // Predicated region
    $region6: #{tpu_custom_call.1} parent=1 // pred_check
      _
    $region7: #{tpu_custom_call.1} parent=1 // pred_check_branch
      %24 = sbr.rel (0) target = $region9
    $region8: #{tpu_custom_call.1} parent=1 // pred_region
      %s26 = ssub.s32 1024, 1024
      %27 = vsyncadd [#allocation6], %s26
      %s28 = sshll.u32 [#allocation5], 4
      %s29 = int_to_ptr.vmem [resolvable:$true] %s28
      %34 = dma.hbm_to_vmem [thread:$0]  %s1, 1024, %s29, [#allocation6], 64, 64, 4
    $region9: #{tpu_custom_call.1} parent=1 // pred_fallthru
      _
    // Predicated region
    $region10: #{tpu_custom_call.1} parent=1 // pred_check
      _
    $region11: #{tpu_custom_call.1} parent=1 // pred_check_branch
      %36 = sbr.rel (0) target = $region13
    $region12: #{tpu_custom_call.1} parent=1 // pred_region
      %s38 = ssub.s32 512, 512
      %39 = vsyncadd [#allocation6], %s38
      %s40 = sshll.u32 [#allocation7], 4
      %s41 = int_to_ptr.vmem [resolvable:$true] %s40
      %46 = dma.hbm_to_vmem [thread:$0]  %s2, 512, %s41, [#allocation6], 128, 128, 8
    $region13: #{tpu_custom_call.1} parent=1 // pred_fallthru
      _
    // Predicated region
    $region14: #{tpu_custom_call.1} parent=1 // pred_check
      _
    $region15: #{tpu_custom_call.1} parent=1 // pred_check_branch
      %48 = sbr.rel (0) target = $region17
    $region16: #{tpu_custom_call.1} parent=1 // pred_region
      %49 = dma.done [#allocation3], 512
    $region17: #{tpu_custom_call.1} parent=1 // pred_fallthru
      _
    // Predicated region
    $region18: #{tpu_custom_call.1} parent=1 // pred_check
      _
    $region19: #{tpu_custom_call.1} parent=1 // pred_check_branch
      %51 = sbr.rel (0) target = $region21
    $region20: #{tpu_custom_call.1} parent=1 // pred_region
      %52 = dma.done [#allocation6], 1024
    $region21: #{tpu_custom_call.1} parent=1 // pred_fallthru
      _
    // Predicated region
    $region22: #{tpu_custom_call.1} parent=1 // pred_check
      _
    $region23: #{tpu_custom_call.1} parent=1 // pred_check_branch
      %54 = sbr.rel (0) target = $region25
    $region24: #{tpu_custom_call.1} parent=1 // pred_region
      %55 = dma.done [#allocation6], 512
    $region25: #{tpu_custom_call.1} parent=1 // pred_fallthru
      _
    %v57 = vld [vmem:[#allocation2] sm:$0xf]
    %v58 = vld [vmem:[#allocation2 + $0x4] sm:$0xf]
    %v59 = vld [vmem:[#allocation2 + $0x8] sm:$0xf]
    %v60 = vld [vmem:[#allocation2 + $0xc] sm:$0xf]
    %v61 = vld [vmem:[#allocation2 + $0x10] sm:$0xf]
    %v62 = vld [vmem:[#allocation2 + $0x14] sm:$0xf]
    %v63 = vld [vmem:[#allocation2 + $0x18] sm:$0xf]
    %v64 = vld [vmem:[#allocation2 + $0x1c] sm:$0xf]
    %v65 = vld [vmem:[#allocation5] sm:$0xf]
    %v66 = vld [vmem:[#allocation5 + $0x4] sm:$0xf]
    %v67 = vld [vmem:[#allocation5 + $0x8] sm:$0xf]
    %v68 = vld [vmem:[#allocation5 + $0xc] sm:$0xf]
    %v69 = vld [vmem:[#allocation5 + $0x10] sm:$0xf]
    %v70 = vld [vmem:[#allocation5 + $0x14] sm:$0xf]
    %v71 = vld [vmem:[#allocation5 + $0x18] sm:$0xf]
    %v72 = vld [vmem:[#allocation5 + $0x1c] sm:$0xf]
    %v73 = vld [vmem:[#allocation5 + $0x20] sm:$0xf]
    %v74 = vld [vmem:[#allocation5 + $0x24] sm:$0xf]
    %v75 = vld [vmem:[#allocation5 + $0x28] sm:$0xf]
    %v76 = vld [vmem:[#allocation5 + $0x2c] sm:$0xf]
    %v77 = vld [vmem:[#allocation5 + $0x30] sm:$0xf]
    %v78 = vld [vmem:[#allocation5 + $0x34] sm:$0xf]
    %v79 = vld [vmem:[#allocation5 + $0x38] sm:$0xf]
    %v80 = vld [vmem:[#allocation5 + $0x3c] sm:$0xf]
    %v89 = vunpack.c.l.b16 %v57
    %v90 = vunpack.c.l.b16 %v58
    %v91 = vunpack.c.l.b16 %v59
    %v92 = vunpack.c.l.b16 %v60
    %v93 = vunpack.c.l.b16 %v61
    %v94 = vunpack.c.l.b16 %v62
    %v95 = vunpack.c.l.b16 %v63
    %v96 = vunpack.c.l.b16 %v64
    %v97 = vpack.c.b16 %v90, %v89
    %v98 = vpack.c.b16 %v92, %v91
    %v99 = vpack.c.b16 %v94, %v93
    %v100 = vpack.c.b16 %v96, %v95
    %v121 = vunpack.c.l.b16 %v65
    %v122 = vunpack.c.l.b16 %v66
    %v123 = vunpack.c.l.b16 %v67
    %v124 = vunpack.c.l.b16 %v68
    %v125 = vunpack.c.l.b16 %v69
    %v126 = vunpack.c.l.b16 %v70
    %v127 = vunpack.c.l.b16 %v71
    %v128 = vunpack.c.l.b16 %v72
    %v129 = vunpack.c.l.b16 %v73
    %v130 = vunpack.c.l.b16 %v74
    %v131 = vunpack.c.l.b16 %v75
    %v132 = vunpack.c.l.b16 %v76
    %v133 = vunpack.c.l.b16 %v77
    %v134 = vunpack.c.l.b16 %v78
    %v135 = vunpack.c.l.b16 %v79
    %v136 = vunpack.c.l.b16 %v80
    %v137 = vpack.c.b16 %v122, %v121
    %v138 = vpack.c.b16 %v124, %v123
    %v139 = vpack.c.b16 %v126, %v125
    %v140 = vpack.c.b16 %v128, %v127
    %v141 = vpack.c.b16 %v130, %v129
    %v142 = vpack.c.b16 %v132, %v131
    %v143 = vpack.c.b16 %v134, %v133
    %v144 = vpack.c.b16 %v136, %v135
    %153 = vmatprep.subr.bf16.mxu0 0
    %154 = vmatpush1.bf16.msra.mxu0 %v137
    %155 = vmatprep.subr.bf16.mxu0 0
    %156 = vmatpush1.bf16.msra.mxu0 %v138
    %157 = vmatprep.subr.bf16.mxu0 0
    %158 = vmatpush1.bf16.msra.mxu0 %v139
    %159 = vmatprep.subr.bf16.mxu0 0
    %160 = vmatpush1.bf16.msra.mxu0 %v140
    %161 = vmatprep.subr.bf16.mxu0 0
    %162 = vmatpush1.bf16.msra.mxu0 %v141
    %163 = vmatprep.subr.bf16.mxu0 0
    %164 = vmatpush1.bf16.msra.mxu0 %v142
    %165 = vmatprep.subr.bf16.mxu0 0
    %166 = vmatpush1.bf16.msra.mxu0 %v143
    %167 = vmatprep.subr.bf16.mxu0 0
    %168 = vmatpush1.bf16.msra.mxu0 %v144
    %169 = vmatprep.subr.bf16.mxu0 0
    %170 = vmatpush1.bf16.msra.mxu0 0
    %171 = vmatprep.subr.bf16.mxu0 0
    %172 = vmatpush1.bf16.msra.mxu0 0
    %173 = vmatprep.subr.bf16.mxu0 0
    %174 = vmatpush1.bf16.msra.mxu0 0
    %175 = vmatprep.subr.bf16.mxu0 0
    %176 = vmatpush1.bf16.msra.mxu0 0
    %177 = vmatprep.subr.bf16.mxu0 0
    %178 = vmatpush1.bf16.msra.mxu0 0
    %179 = vmatprep.subr.bf16.mxu0 0
    %180 = vmatpush1.bf16.msra.mxu0 0
    %181 = vmatprep.subr.bf16.mxu0 0
    %182 = vmatpush1.bf16.msra.mxu0 0
    %183 = vmatprep.subr.bf16.mxu0 0
    %184 = vmatpush1.bf16.msra.mxu0 0
    %185 = vmatprep.mubr.bf16.mxu0 0
    %186 = vmatmul.mubr.bf16.gmra.mrb[0].mxu0 %v97
    %v187 = vpop.f32.mrb[0].mxu0
    %v188 = vadd.f32 0.0, %v187
    %v189 = vpop.f32.mrb[0].mxu0
    %v190 = vpop.f32.mrb[0].mxu0
    %v191 = vadd.f32 0.0, %v190
    %v192 = vpop.f32.mrb[0].mxu0
    %193 = vmatprep.mubr.bf16.mxu0 0
    %194 = vmatmul.mubr.bf16.gmra.mrb[0].mxu0 %v98
    %v195 = vpop.f32.mrb[0].mxu0
    %v196 = vadd.f32 0.0, %v195
    %v197 = vpop.f32.mrb[0].mxu0
    %v198 = vpop.f32.mrb[0].mxu0
    %v199 = vadd.f32 0.0, %v198
    %v200 = vpop.f32.mrb[0].mxu0
    %201 = vmatprep.mubr.bf16.mxu0 0
    %202 = vmatmul.mubr.bf16.gmra.mrb[0].mxu0 %v99
    %v203 = vpop.f32.mrb[0].mxu0
    %v204 = vadd.f32 0.0, %v203
    %v205 = vpop.f32.mrb[0].mxu0
    %v206 = vpop.f32.mrb[0].mxu0
    %v207 = vadd.f32 0.0, %v206
    %v208 = vpop.f32.mrb[0].mxu0
    %209 = vmatprep.mubr.bf16.mxu0 0
    %210 = vmatmul.mubr.bf16.gmra.mrb[0].mxu0 %v100
    %v211 = vpop.f32.mrb[0].mxu0
    %v212 = vadd.f32 0.0, %v211
    %v213 = vpop.f32.mrb[0].mxu0
    %v214 = vpop.f32.mrb[0].mxu0
    %v215 = vadd.f32 0.0, %v214
    %v216 = vpop.f32.mrb[0].mxu0
    %217 = vdwg.mxu0
    %v218 = vld [vmem:[#allocation7] sm:$0xff]
    %v219 = vld [vmem:[#allocation7 + $0x8] sm:$0xff]
    %v220 = vld [vmem:[#allocation7 + $0x10] sm:$0xff]
    %v221 = vld [vmem:[#allocation7 + $0x18] sm:$0xff]
    %v222 = vadd.f32 %v188, %v218
    %v223 = vadd.f32 %v191, %v219
    %v224 = vadd.f32 %v196, %v220
    %v225 = vadd.f32 %v199, %v221
    %v226 = vadd.f32 %v204, %v218
    %v227 = vadd.f32 %v207, %v219
    %v228 = vadd.f32 %v212, %v220
    %v229 = vadd.f32 %v215, %v221
    %230 = vst [vmem:[#allocation8] sm:$0xff] %v222
    %231 = vst [vmem:[#allocation8 + $0x8] sm:$0xff] %v223
    %232 = vst [vmem:[#allocation8 + $0x10] sm:$0xff] %v224
    %233 = vst [vmem:[#allocation8 + $0x18] sm:$0xff] %v225
    %234 = vst [vmem:[#allocation8 + $0x20] sm:$0xff] %v226
    %235 = vst [vmem:[#allocation8 + $0x28] sm:$0xff] %v227
    %236 = vst [vmem:[#allocation8 + $0x30] sm:$0xff] %v228
    %237 = vst [vmem:[#allocation8 + $0x38] sm:$0xff] %v229
    // Predicated region
    $region26: #{tpu_custom_call.1} parent=1 // pred_check
      _
    $region27: #{tpu_custom_call.1} parent=1 // pred_check_branch
      %239 = sbr.rel (0) target = $region29
    $region28: #{tpu_custom_call.1} parent=1 // pred_region
      %s241 = ssub.s32 1024, 1024
      %242 = vsyncadd [#allocation4], %s241
      %s243 = sshll.u32 [#allocation8], 4
      %s244 = int_to_ptr.vmem [resolvable:$true] %s243
      %249 = dma.vmem_to_hbm [thread:$0]  %s244, 1024, %s3, [#allocation4], 128, 128, 8
    $region29: #{tpu_custom_call.1} parent=1 // pred_fallthru
      _
    // Predicated region
    $region30: #{tpu_custom_call.1} parent=1 // pred_check
      _
    $region31: #{tpu_custom_call.1} parent=1 // pred_check_branch
      %251 = sbr.rel (0) target = $region33
    $region32: #{tpu_custom_call.1} parent=1 // pred_region
      %252 = dma.done [#allocation4], 1024
    $region33: #{tpu_custom_call.1} parent=1 // pred_fallthru
      _
    %253 = vsyncpa [#allocation3], 1
    %254 = vsyncpa [#allocation6], 1
    %255 = vsyncpa [#allocation4], 1

</llo_original>
